<compile_context>
chip_gen: v7x
topology: tpu7x:2x2x1
jax: 0.10.0
libtpu: 0.0.40
codegen_flags: <defaults>
</compile_context>

<pallas_src>
import math

import jax
import jax.numpy as jnp
from jax.experimental import pallas as pl
from jax.experimental.pallas import tpu as pltpu


_TWO_PI = 2.0 * math.pi

# Cephes single-precision constants: pi/2 split (Cody-Waite) and minimax
# polynomial coefficients for sin/cos on the reduced range [-pi/4, pi/4].
_PIO2_1 = 1.5703125                       # 7 mantissa bits -> q*_PIO2_1 exact
_PIO2_2 = 4.837512969970703125e-4
_PIO2_3 = 7.549789948768648e-8
_SIN_C1 = -1.9515295891e-4
_SIN_C2 = 8.3321608736e-3
_SIN_C3 = -1.6666654611e-1
_COS_C1 = 2.443315711809948e-5
_COS_C2 = -1.388731625493765e-3
_COS_C3 = 4.166664568298827e-2


def _fused_sincos(theta):
    """sin(theta), cos(theta) with one shared range reduction (pure VPU ops).

    Accuracy ~1-2 f32 ulp for the moderate |theta| seen in positional
    encodings; differs from jnp.sin / jnp.cos only at ULP level.
    """
    q = jnp.floor(theta * (2.0 / math.pi) + 0.5)      # nearest pi/2 quadrant
    r = theta - q * _PIO2_1
    r = r - q * _PIO2_2
    r = r - q * _PIO2_3                               # r in [-pi/4, pi/4]
    z = r * r
    sin_r = ((_SIN_C1 * z + _SIN_C2) * z + _SIN_C3) * z * r + r
    cos_r = ((_COS_C1 * z + _COS_C2) * z + _COS_C3) * z * z - 0.5 * z + 1.0
    qi = q.astype(jnp.int32)
    swap = (qi & 1) != 0                              # odd quadrant -> swap
    sin_t = jnp.where(swap, cos_r, sin_r)
    cos_t = jnp.where(swap, sin_r, cos_r)
    sin_t = jnp.where((qi & 2) != 0, -sin_t, sin_t)   # quadrants 2,3
    cos_t = jnp.where(((qi + 1) & 2) != 0, -cos_t, cos_t)  # quadrants 1,2
    return sin_t, cos_t


def _make_kernel(D, Dp, TB, exact_trig):
    """One (batch block, lane tile) step.

    x_ref:    (TB, TL)       positions (lane-resident along L)
    freq_ref: (Dp, 1)        frequency bands as a column (sublane-resident)
    o_ref:    (TB, TL, 2*D)  output block in PyTorch layout
    """

    def kernel(x_ref, freq_ref, o_ref):
        freqs = freq_ref[...]                               # (Dp, 1), hoisted
        for row in range(TB):                               # TB is small & static
            # Fold 2*pi into the small (1, TL) operand -> same association /
            # rounding of x_proj as the reference: (2*pi*x) * f.
            xs = _TWO_PI * x_ref[pl.ds(row, 1), :]          # (1, TL)
            theta = freqs * xs                              # (Dp, TL) lane-dense
            if exact_trig:
                s, c = jnp.sin(theta), jnp.cos(theta)
            else:
                s, c = _fused_sincos(theta)                 # shared reduction
            full = jnp.concatenate([s, c], axis=0)          # (2*Dp, TL)
            t = jnp.transpose(full)                         # (TL, 2*Dp) -- XLU
            if Dp != D:                                     # drop pad channels
                t = jnp.concatenate([t[:, :D], t[:, Dp:Dp + D]], axis=1)
            o_ref[row] = t.astype(o_ref.dtype)              # (TL, 2*D) store

    return kernel


def _pick_tiles(B, L_pad, D, out_itemsize, tile_budget_bytes):
    """Pick (TB, TL): batch rows and lane tile per grid step."""
    if B % 8 == 0:
        TB = 8            # meets the 8-sublane block rule, bigger writebacks
    elif B <= 8:
        TB = B            # full extent -> always a legal block
    else:
        # Second-minor block dim of 1; accepted by current Mosaic (sub-tile
        # sublane blocks), just less dense.  Rare shape in practice.
        TB = 1
    row_bytes = 2 * D * out_itemsize
    if TB > 1 and TB * 128 * row_bytes > tile_budget_bytes:
        TB = 1            # huge-D edge case: keep the block within budget
    cap = max(128, ((tile_budget_bytes // (TB * row_bytes)) // 128) * 128)
    TL = 128
    for cand in (8192, 4096, 2048, 1024, 512, 256, 128):
        if cand <= cap and L_pad % cand == 0:
            TL = cand
            break
    return TB, TL


def fourier_features(x, freq_bands, *, out_dtype=None, exact_trig=False,
                     tile_budget_bytes=4 * 1024 * 1024):
    """Pallas TPU FourierFeatures forward.

    x:          (B, L) positions
    freq_bands: (D,)   learned frequency bands
    out_dtype:  optional narrower store dtype (e.g. jnp.bfloat16) to halve HBM
                write traffic on v5e/v6e; compute is always f32.
    exact_trig: use jnp.sin/jnp.cos instead of the fused sincos (bit-matches
                the stock lowering at ~2x VALU cost).
    Returns (B, L, 2*D), matching the PyTorch module layout.
    """
    B, L = x.shape
    D = freq_bands.shape[0]
    out_dtype = x.dtype if out_dtype is None else jnp.dtype(out_dtype)

    x = x.astype(jnp.float32)
    # Pad L to a lane multiple so every block (and the in-kernel transpose) is
    # tile-aligned; the padding is sliced off after the call.
    L_pad = ((L + 127) // 128) * 128
    if L_pad != L:
        x = jnp.pad(x, ((0, 0), (0, L_pad - L)))

    # Pad D to a sublane multiple for the channel-major compute / transpose.
    Dp = ((D + 7) // 8) * 8
    freq_col = freq_bands.astype(jnp.float32).reshape(D, 1)
    if Dp != D:
        freq_col = jnp.pad(freq_col, ((0, Dp - D), (0, 0)))

    TB, TL = _pick_tiles(B, L_pad, D, jnp.dtype(out_dtype).itemsize,
                         tile_budget_bytes)
    grid = (B // TB, L_pad // TL)

    out = pl.pallas_call(
        _make_kernel(D, Dp, TB, exact_trig),
        out_shape=jax.ShapeDtypeStruct((B, L_pad, 2 * D), out_dtype),
        grid_spec=pltpu.PrefetchScalarGridSpec(
            num_scalar_prefetch=0,
            grid=grid,
            in_specs=[
                # TB rows x TL positions per step; L stays on lanes.
                pl.BlockSpec((TB, TL), lambda b, lt: (b, lt)),
                # Frequency bands: tiny, block == full array, resident.
                pl.BlockSpec((Dp, 1), lambda b, lt: (0, 0)),
            ],
            # PyTorch-layout output block; last dim equals the full 2*D extent
            # so the block is legal, and each tile's HBM destination is one
            # contiguous TB*TL*2*D run (no wrapper transpose needed).
            out_specs=pl.BlockSpec((TB, TL, 2 * D), lambda b, lt: (b, lt, 0)),
        ),
        compiler_params=pltpu.CompilerParams(
            # Independent output tiles -> shard across v7x's two TensorCores.
            dimension_semantics=("parallel", "parallel"),
            # Above v5e's 16 MiB scoped default, well under v7x's 64 MiB VMEM.
            vmem_limit_bytes=32 * 1024 * 1024,
        ),
        cost_estimate=pl.CostEstimate(
            flops=40 * B * L_pad * D,
            transcendentals=2 * B * L_pad * D,
            bytes_accessed=(B * L_pad * 4
                            + B * L_pad * 2 * D * jnp.dtype(out_dtype).itemsize),
        ),
    )(x, freq_col)

    if L_pad != L:
        out = out[:, :L, :]
    return out


def fourier_features_ref(x, freq_bands):
    """Pure-JAX reference mirroring the PyTorch forward."""
    x_proj = 2.0 * math.pi * x.astype(jnp.float32)[..., None] * freq_bands
    return jnp.concatenate([jnp.sin(x_proj), jnp.cos(x_proj)], axis=-1)


if __name__ == "__main__":
    key = jax.random.PRNGKey(0)
    k_x1, k_x2, k_f = jax.random.split(key, 3)

    output_dim = 32
    input_scale = 1.0
    # Deterministic "parameter" matching torch.randn(output_dim) * input_scale.
    freq_bands = jax.random.normal(k_f, (output_dim,), dtype=jnp.float32) * input_scale

    # Case 1: tiny shapes from the module docstring (B=2, L=8) -> padded to one
    # 128-lane block, exercises the L-padding + slice path.
    x_small = jax.random.uniform(k_x1, (2, 8), dtype=jnp.float32) * 10.0
    out_small = jax.block_until_ready(fourier_features(x_small, freq_bands))
    ref_small = fourier_features_ref(x_small, freq_bands)
    assert out_small.shape == (2, 8, 2 * output_dim), out_small.shape
    assert jnp.allclose(out_small, ref_small, atol=2e-5, rtol=2e-5), "small-case mismatch"

    # Case 2: lane-aligned L -> exercises the tiled grid + in-kernel transpose.
    x_big = jax.random.uniform(k_x2, (2, 256), dtype=jnp.float32) * 10.0
    out_big = jax.block_until_ready(fourier_features(x_big, freq_bands))
    ref_big = fourier_features_ref(x_big, freq_bands)
    assert out_big.shape == (2, 256, 2 * output_dim), out_big.shape
    assert jnp.allclose(out_big, ref_big, atol=2e-5, rtol=2e-5), "tiled-case mismatch"

    # Case 3: exact-trig path (stock jnp.sin / jnp.cos lowering).
    out_exact = jax.block_until_ready(
        fourier_features(x_big, freq_bands, exact_trig=True))
    assert jnp.allclose(out_exact, ref_big, atol=2e-5, rtol=2e-5), "exact-trig mismatch"

    # Case 4: bf16 store option (halves HBM writes on v5e/v6e); compute is f32.
    out_bf16 = jax.block_until_ready(
        fourier_features(x_big, freq_bands, out_dtype=jnp.bfloat16))
    assert out_bf16.dtype == jnp.bfloat16
    assert jnp.allclose(out_bf16.astype(jnp.float32), ref_big, atol=3e-2, rtol=3e-2), \
        "bf16 mismatch"

    print("KERNEL_OK")
</pallas_src>

<mosaic_0001>
module attributes {stable_mosaic.version = 11 : i64} {
  func.func @kernel(%arg0: i32, %arg1: i32, %arg2: memref<2x128xf32, #tpu.memory_space<vmem>>, %arg3: memref<32x1xf32, #tpu.memory_space<vmem>>, %arg4: memref<2x128x64xf32, #tpu.memory_space<vmem>>) attributes {dimension_semantics = [#tpu.dimension_semantics<parallel>, #tpu.dimension_semantics<parallel>], iteration_bounds = array<i64: 1, 1>, scalar_prefetch = 0 : i64, scratch_operands = 0 : i64, tpu.core_type = #tpu.core_type<tc>, window_params = [{transform_indices = @transform_0, window_bounds = array<i64: 2, 128>}, {pipeline_mode = #tpu.pipeline_mode<synchronous>, transform_indices = @transform_1, window_bounds = array<i64: 32, 1>}, {transform_indices = @transform_2, window_bounds = array<i64: 2, 128, 64>}]} {
    %c0 = arith.constant 0 : index
    %c0_0 = arith.constant 0 : index
    %0 = vector.load %arg3[%c0, %c0_0] : memref<32x1xf32, #tpu.memory_space<vmem>>, vector<32x1xf32>
    %c0_1 = arith.constant 0 : index
    %c0_2 = arith.constant 0 : index
    %1 = vector.load %arg2[%c0_1, %c0_2] : memref<2x128xf32, #tpu.memory_space<vmem>>, vector<1x128xf32>
    %cst = arith.constant 6.28318548 : f32
    %2 = vector.broadcast %cst : f32 to vector<1x128xf32>
    %3 = arith.mulf %2, %1 : vector<1x128xf32>
    %4 = vector.broadcast %0 : vector<32x1xf32> to vector<32x128xf32>
    %5 = vector.broadcast %3 : vector<1x128xf32> to vector<32x128xf32>
    %6 = arith.mulf %4, %5 : vector<32x128xf32>
    %cst_3 = arith.constant 0.636619746 : f32
    %7 = vector.broadcast %cst_3 : f32 to vector<32x128xf32>
    %8 = arith.mulf %6, %7 : vector<32x128xf32>
    %cst_4 = arith.constant 5.000000e-01 : f32
    %9 = vector.broadcast %cst_4 : f32 to vector<32x128xf32>
    %10 = arith.addf %8, %9 : vector<32x128xf32>
    %11 = math.floor %10 : vector<32x128xf32>
    %cst_5 = arith.constant 1.5703125 : f32
    %12 = vector.broadcast %cst_5 : f32 to vector<32x128xf32>
    %13 = arith.mulf %11, %12 : vector<32x128xf32>
    %14 = arith.subf %6, %13 : vector<32x128xf32>
    %cst_6 = arith.constant 4.83751297E-4 : f32
    %15 = vector.broadcast %cst_6 : f32 to vector<32x128xf32>
    %16 = arith.mulf %11, %15 : vector<32x128xf32>
    %17 = arith.subf %14, %16 : vector<32x128xf32>
    %cst_7 = arith.constant 7.549790e-08 : f32
    %18 = vector.broadcast %cst_7 : f32 to vector<32x128xf32>
    %19 = arith.mulf %11, %18 : vector<32x128xf32>
    %20 = arith.subf %17, %19 : vector<32x128xf32>
    %21 = arith.mulf %20, %20 : vector<32x128xf32>
    %cst_8 = arith.constant -1.95152956E-4 : f32
    %22 = vector.broadcast %cst_8 : f32 to vector<32x128xf32>
    %23 = arith.mulf %22, %21 : vector<32x128xf32>
    %cst_9 = arith.constant 0.00833216123 : f32
    %24 = vector.broadcast %cst_9 : f32 to vector<32x128xf32>
    %25 = arith.addf %23, %24 : vector<32x128xf32>
    %26 = arith.mulf %25, %21 : vector<32x128xf32>
    %cst_10 = arith.constant -0.166666552 : f32
    %27 = vector.broadcast %cst_10 : f32 to vector<32x128xf32>
    %28 = arith.addf %26, %27 : vector<32x128xf32>
    %29 = arith.mulf %28, %21 : vector<32x128xf32>
    %30 = arith.mulf %29, %20 : vector<32x128xf32>
    %31 = arith.addf %30, %20 : vector<32x128xf32>
    %cst_11 = arith.constant 2.44331568E-5 : f32
    %32 = vector.broadcast %cst_11 : f32 to vector<32x128xf32>
    %33 = arith.mulf %32, %21 : vector<32x128xf32>
    %cst_12 = arith.constant -0.00138873165 : f32
    %34 = vector.broadcast %cst_12 : f32 to vector<32x128xf32>
    %35 = arith.addf %33, %34 : vector<32x128xf32>
    %36 = arith.mulf %35, %21 : vector<32x128xf32>
    %cst_13 = arith.constant 0.0416666456 : f32
    %37 = vector.broadcast %cst_13 : f32 to vector<32x128xf32>
    %38 = arith.addf %36, %37 : vector<32x128xf32>
    %39 = arith.mulf %38, %21 : vector<32x128xf32>
    %40 = arith.mulf %39, %21 : vector<32x128xf32>
    %cst_14 = arith.constant 5.000000e-01 : f32
    %41 = vector.broadcast %cst_14 : f32 to vector<32x128xf32>
    %42 = arith.mulf %41, %21 : vector<32x128xf32>
    %43 = arith.subf %40, %42 : vector<32x128xf32>
    %cst_15 = arith.constant 1.000000e+00 : f32
    %44 = vector.broadcast %cst_15 : f32 to vector<32x128xf32>
    %45 = arith.addf %43, %44 : vector<32x128xf32>
    %46 = arith.fptosi %11 : vector<32x128xf32> to vector<32x128xi32>
    %c1_i32 = arith.constant 1 : i32
    %47 = vector.broadcast %c1_i32 : i32 to vector<32x128xi32>
    %48 = arith.andi %46, %47 : vector<32x128xi32>
    %c0_i32 = arith.constant 0 : i32
    %49 = vector.broadcast %c0_i32 : i32 to vector<32x128xi32>
    %50 = arith.cmpi ne, %48, %49 : vector<32x128xi32>
    %51 = arith.select %50, %45, %31 : vector<32x128xi1>, vector<32x128xf32>
    %52 = arith.select %50, %31, %45 : vector<32x128xi1>, vector<32x128xf32>
    %c2_i32 = arith.constant 2 : i32
    %53 = vector.broadcast %c2_i32 : i32 to vector<32x128xi32>
    %54 = arith.andi %46, %53 : vector<32x128xi32>
    %c0_i32_16 = arith.constant 0 : i32
    %55 = vector.broadcast %c0_i32_16 : i32 to vector<32x128xi32>
    %56 = arith.cmpi ne, %54, %55 : vector<32x128xi32>
    %cst_17 = arith.constant 0.000000e+00 : f32
    %57 = vector.broadcast %cst_17 : f32 to vector<32x128xf32>
    %58 = arith.subf %57, %51 : vector<32x128xf32>
    %59 = arith.select %56, %58, %51 : vector<32x128xi1>, vector<32x128xf32>
    %c1_i32_18 = arith.constant 1 : i32
    %60 = vector.broadcast %c1_i32_18 : i32 to vector<32x128xi32>
    %61 = arith.addi %46, %60 : vector<32x128xi32>
    %c2_i32_19 = arith.constant 2 : i32
    %62 = vector.broadcast %c2_i32_19 : i32 to vector<32x128xi32>
    %63 = arith.andi %61, %62 : vector<32x128xi32>
    %c0_i32_20 = arith.constant 0 : i32
    %64 = vector.broadcast %c0_i32_20 : i32 to vector<32x128xi32>
    %65 = arith.cmpi ne, %63, %64 : vector<32x128xi32>
    %cst_21 = arith.constant 0.000000e+00 : f32
    %66 = vector.broadcast %cst_21 : f32 to vector<32x128xf32>
    %67 = arith.subf %66, %52 : vector<32x128xf32>
    %68 = arith.select %65, %67, %52 : vector<32x128xi1>, vector<32x128xf32>
    %69 = tpu.concatenate %59, %68 in 0 : vector<32x128xf32>, vector<32x128xf32> -> vector<64x128xf32>
    %70 = tpu.transpose %69, [1, 0] : vector<64x128xf32> -> vector<128x64xf32>
    %c0_22 = arith.constant 0 : index
    %c0_23 = arith.constant 0 : index
    %c0_24 = arith.constant 0 : index
    %71 = vector.load %arg4[%c0_22, %c0_23, %c0_24] : memref<2x128x64xf32, #tpu.memory_space<vmem>>, vector<1x128x64xf32>
    %72 = vector.shape_cast %71 : vector<1x128x64xf32> to vector<128x64xf32>
    %73 = vector.shape_cast %70 : vector<128x64xf32> to vector<1x128x64xf32>
    tpu.vector_store %arg4[%c0_22, %c0_23, %c0_24], %73 {strides = array<i32>} : memref<2x128x64xf32, #tpu.memory_space<vmem>>, vector<1x128x64xf32>,
    %c1 = arith.constant 1 : index
    %c0_25 = arith.constant 0 : index
    %74 = vector.load %arg2[%c1, %c0_25] : memref<2x128xf32, #tpu.memory_space<vmem>>, vector<1x128xf32>
    %cst_26 = arith.constant 6.28318548 : f32
    %75 = vector.broadcast %cst_26 : f32 to vector<1x128xf32>
    %76 = arith.mulf %75, %74 : vector<1x128xf32>
    %77 = vector.broadcast %0 : vector<32x1xf32> to vector<32x128xf32>
    %78 = vector.broadcast %76 : vector<1x128xf32> to vector<32x128xf32>
    %79 = arith.mulf %77, %78 : vector<32x128xf32>
    %cst_27 = arith.constant 0.636619746 : f32
    %80 = vector.broadcast %cst_27 : f32 to vector<32x128xf32>
    %81 = arith.mulf %79, %80 : vector<32x128xf32>
    %cst_28 = arith.constant 5.000000e-01 : f32
    %82 = vector.broadcast %cst_28 : f32 to vector<32x128xf32>
    %83 = arith.addf %81, %82 : vector<32x128xf32>
    %84 = math.floor %83 : vector<32x128xf32>
    %cst_29 = arith.constant 1.5703125 : f32
    %85 = vector.broadcast %cst_29 : f32 to vector<32x128xf32>
    %86 = arith.mulf %84, %85 : vector<32x128xf32>
    %87 = arith.subf %79, %86 : vector<32x128xf32>
    %cst_30 = arith.constant 4.83751297E-4 : f32
    %88 = vector.broadcast %cst_30 : f32 to vector<32x128xf32>
    %89 = arith.mulf %84, %88 : vector<32x128xf32>
    %90 = arith.subf %87, %89 : vector<32x128xf32>
    %cst_31 = arith.constant 7.549790e-08 : f32
    %91 = vector.broadcast %cst_31 : f32 to vector<32x128xf32>
    %92 = arith.mulf %84, %91 : vector<32x128xf32>
    %93 = arith.subf %90, %92 : vector<32x128xf32>
    %94 = arith.mulf %93, %93 : vector<32x128xf32>
    %cst_32 = arith.constant -1.95152956E-4 : f32
    %95 = vector.broadcast %cst_32 : f32 to vector<32x128xf32>
    %96 = arith.mulf %95, %94 : vector<32x128xf32>
    %cst_33 = arith.constant 0.00833216123 : f32
    %97 = vector.broadcast %cst_33 : f32 to vector<32x128xf32>
    %98 = arith.addf %96, %97 : vector<32x128xf32>
    %99 = arith.mulf %98, %94 : vector<32x128xf32>
    %cst_34 = arith.constant -0.166666552 : f32
    %100 = vector.broadcast %cst_34 : f32 to vector<32x128xf32>
    %101 = arith.addf %99, %100 : vector<32x128xf32>
    %102 = arith.mulf %101, %94 : vector<32x128xf32>
    %103 = arith.mulf %102, %93 : vector<32x128xf32>
    %104 = arith.addf %103, %93 : vector<32x128xf32>
    %cst_35 = arith.constant 2.44331568E-5 : f32
    %105 = vector.broadcast %cst_35 : f32 to vector<32x128xf32>
    %106 = arith.mulf %105, %94 : vector<32x128xf32>
    %cst_36 = arith.constant -0.00138873165 : f32
    %107 = vector.broadcast %cst_36 : f32 to vector<32x128xf32>
    %108 = arith.addf %106, %107 : vector<32x128xf32>
    %109 = arith.mulf %108, %94 : vector<32x128xf32>
    %cst_37 = arith.constant 0.0416666456 : f32
    %110 = vector.broadcast %cst_37 : f32 to vector<32x128xf32>
    %111 = arith.addf %109, %110 : vector<32x128xf32>
    %112 = arith.mulf %111, %94 : vector<32x128xf32>
    %113 = arith.mulf %112, %94 : vector<32x128xf32>
    %cst_38 = arith.constant 5.000000e-01 : f32
    %114 = vector.broadcast %cst_38 : f32 to vector<32x128xf32>
    %115 = arith.mulf %114, %94 : vector<32x128xf32>
    %116 = arith.subf %113, %115 : vector<32x128xf32>
    %cst_39 = arith.constant 1.000000e+00 : f32
    %117 = vector.broadcast %cst_39 : f32 to vector<32x128xf32>
    %118 = arith.addf %116, %117 : vector<32x128xf32>
    %119 = arith.fptosi %84 : vector<32x128xf32> to vector<32x128xi32>
    %c1_i32_40 = arith.constant 1 : i32
    %120 = vector.broadcast %c1_i32_40 : i32 to vector<32x128xi32>
    %121 = arith.andi %119, %120 : vector<32x128xi32>
    %c0_i32_41 = arith.constant 0 : i32
    %122 = vector.broadcast %c0_i32_41 : i32 to vector<32x128xi32>
    %123 = arith.cmpi ne, %121, %122 : vector<32x128xi32>
    %124 = arith.select %123, %118, %104 : vector<32x128xi1>, vector<32x128xf32>
    %125 = arith.select %123, %104, %118 : vector<32x128xi1>, vector<32x128xf32>
    %c2_i32_42 = arith.constant 2 : i32
    %126 = vector.broadcast %c2_i32_42 : i32 to vector<32x128xi32>
    %127 = arith.andi %119, %126 : vector<32x128xi32>
    %c0_i32_43 = arith.constant 0 : i32
    %128 = vector.broadcast %c0_i32_43 : i32 to vector<32x128xi32>
    %129 = arith.cmpi ne, %127, %128 : vector<32x128xi32>
    %cst_44 = arith.constant 0.000000e+00 : f32
    %130 = vector.broadcast %cst_44 : f32 to vector<32x128xf32>
    %131 = arith.subf %130, %124 : vector<32x128xf32>
    %132 = arith.select %129, %131, %124 : vector<32x128xi1>, vector<32x128xf32>
    %c1_i32_45 = arith.constant 1 : i32
    %133 = vector.broadcast %c1_i32_45 : i32 to vector<32x128xi32>
    %134 = arith.addi %119, %133 : vector<32x128xi32>
    %c2_i32_46 = arith.constant 2 : i32
    %135 = vector.broadcast %c2_i32_46 : i32 to vector<32x128xi32>
    %136 = arith.andi %134, %135 : vector<32x128xi32>
    %c0_i32_47 = arith.constant 0 : i32
    %137 = vector.broadcast %c0_i32_47 : i32 to vector<32x128xi32>
    %138 = arith.cmpi ne, %136, %137 : vector<32x128xi32>
    %cst_48 = arith.constant 0.000000e+00 : f32
    %139 = vector.broadcast %cst_48 : f32 to vector<32x128xf32>
    %140 = arith.subf %139, %125 : vector<32x128xf32>
    %141 = arith.select %138, %140, %125 : vector<32x128xi1>, vector<32x128xf32>
    %142 = tpu.concatenate %132, %141 in 0 : vector<32x128xf32>, vector<32x128xf32> -> vector<64x128xf32>
    %143 = tpu.transpose %142, [1, 0] : vector<64x128xf32> -> vector<128x64xf32>
    %c1_49 = arith.constant 1 : index
    %c0_50 = arith.constant 0 : index
    %c0_51 = arith.constant 0 : index
    %144 = vector.load %arg4[%c1_49, %c0_50, %c0_51] : memref<2x128x64xf32, #tpu.memory_space<vmem>>, vector<1x128x64xf32>
    %145 = vector.shape_cast %144 : vector<1x128x64xf32> to vector<128x64xf32>
    %146 = vector.shape_cast %143 : vector<128x64xf32> to vector<1x128x64xf32>
    tpu.vector_store %arg4[%c1_49, %c0_50, %c0_51], %146 {strides = array<i32>} : memref<2x128x64xf32, #tpu.memory_space<vmem>>, vector<1x128x64xf32>,
    return
  }
  func.func @transform_0(%arg0: i32, %arg1: i32) -> (i32, i32) {
    %c0_i32 = arith.constant 0 : i32
    return %arg0, %arg1 : i32, i32
  }
  func.func @transform_1(%arg0: i32, %arg1: i32) -> (i32, i32) {
    %c0_i32 = arith.constant 0 : i32
    %c0_i32_0 = arith.constant 0 : i32
    %c0_i32_1 = arith.constant 0 : i32
    return %c0_i32, %c0_i32_0 : i32, i32
  }
  func.func @transform_2(%arg0: i32, %arg1: i32) -> (i32, i32, i32) {
    %c0_i32 = arith.constant 0 : i32
    %c0_i32_0 = arith.constant 0 : i32
    return %arg0, %arg1, %c0_i32 : i32, i32, i32
  }
}

</mosaic_0001>

<llo_original>
// kernel: tpu_custom_call.1
$region0: #{tpu_custom_call.1}
  #allocation0 [shape = 'u32[]', space=smem, size = 0x4, offset = 0x4, fixed_abs, tag = 'smem constant byte address 0x4 - core index']
  #allocation1 [shape = 'u32[144,128]{1,0:T(1,128)}', space=vmem, size = 0x12000, scoped, tag = 'internal scratch']
  %s0 = inlined_call_operand.vmem [shape: f32[2,128], index: 0, kind: input, shape index: {}]
  %s1 = inlined_call_operand.vmem [shape: f32[32,1], index: 1, kind: input, shape index: {}]
  %s2 = inlined_call_operand.vmem [shape: f32[2,128,64], index: 2, kind: output, shape index: {}]
  %s3 = sld [smem:[#allocation0]]
  $region18: #{tpu_custom_call.1} parent=0
    _
  %s5 = ssub.s32 1, %s3
  %s6 = scalar_select 0, %s5, %s3
  // Predicated region
  $region2: #{tpu_custom_call.1} parent=0 // pred_check
    _
  $region3: #{tpu_custom_call.1} parent=0 // pred_check_branch
    %8 = sbr.rel (0) target = $region5
  $region4: #{tpu_custom_call.1} parent=0 // pred_region
    _
  $region5: #{tpu_custom_call.1} parent=0 // pred_fallthru
    _
  // Predicated region
  $region6: #{tpu_custom_call.1} parent=0 // pred_check
    _
  $region7: #{tpu_custom_call.1} parent=0 // pred_check_branch
    %10 = sbr.rel (0) target = $region9
  $region8: #{tpu_custom_call.1} parent=0 // pred_region
    _
  $region9: #{tpu_custom_call.1} parent=0 // pred_fallthru
    _
  %v11 = vld [vmem:[%s1] sm:$0xff]
  %v12 = vld [vmem:[%s1 + $0x8] sm:$0xff]
  %v13 = vld [vmem:[%s1 + $0x10] sm:$0xff]
  %v14 = vld [vmem:[%s1 + $0x18] sm:$0xff]
  %v15 = vld [vmem:[%s0] sm:$0x1]
  %v16 = vmul.f32 %v15, 6.2831855
  %18 = vset.pattern.permute.xlu0 0
  %19 = vperm.xlu0 %18, %v11
  %v20 = vpop.permute.xlu0 %19
  %23 = vset.pattern.permute.xlu0 0
  %24 = vperm.xlu0 %23, %v12
  %v25 = vpop.permute.xlu0 %24
  %28 = vset.pattern.permute.xlu0 0
  %29 = vperm.xlu0 %28, %v13
  %v30 = vpop.permute.xlu0 %29
  %33 = vset.pattern.permute.xlu0 0
  %34 = vperm.xlu0 %33, %v14
  %v35 = vpop.permute.xlu0 %34
  %v37 = vlaneseq
  %v38 = vshrl.u32 %v37, 7
  %v39 = vsub.s32 0, %v38
  %v40 = vrot.slane %v16, %v39
  %v41 = vmul.f32 %v20, %v40
  %v42 = vmul.f32 %v25, %v40
  %v43 = vmul.f32 %v30, %v40
  %v44 = vmul.f32 %v35, %v40
  %v45 = vmul.f32 %v41, 0.63661975
  %v46 = vmul.f32 %v42, 0.63661975
  %v47 = vmul.f32 %v43, 0.63661975
  %v48 = vmul.f32 %v44, 0.63661975
  %v49 = vadd.f32 %v45, 0.5
  %v50 = vadd.f32 %v46, 0.5
  %v51 = vadd.f32 %v47, 0.5
  %v52 = vadd.f32 %v48, 0.5
  %v53 = vfloor.f32 %v49
  %v54 = vfloor.f32 %v50
  %v55 = vfloor.f32 %v51
  %v56 = vfloor.f32 %v52
  %v57 = vmul.f32 %v53, 1.5703125
  %v58 = vmul.f32 %v54, 1.5703125
  %v59 = vmul.f32 %v55, 1.5703125
  %v60 = vmul.f32 %v56, 1.5703125
  %v61 = vsub.f32 %v41, %v57
  %v62 = vsub.f32 %v42, %v58
  %v63 = vsub.f32 %v43, %v59
  %v64 = vsub.f32 %v44, %v60
  %v65 = vmul.f32 %v53, 0.0004837513
  %v66 = vmul.f32 %v54, 0.0004837513
  %v67 = vmul.f32 %v55, 0.0004837513
  %v68 = vmul.f32 %v56, 0.0004837513
  %v69 = vsub.f32 %v61, %v65
  %v70 = vsub.f32 %v62, %v66
  %v71 = vsub.f32 %v63, %v67
  %v72 = vsub.f32 %v64, %v68
  %v73 = vmul.f32 %v53, 7.54979e-08
  %v74 = vmul.f32 %v54, 7.54979e-08
  %v75 = vmul.f32 %v55, 7.54979e-08
  %v76 = vmul.f32 %v56, 7.54979e-08
  %v77 = vsub.f32 %v69, %v73
  %v78 = vsub.f32 %v70, %v74
  %v79 = vsub.f32 %v71, %v75
  %v80 = vsub.f32 %v72, %v76
  %v81 = vmul.f32 %v77, %v77
  %v82 = vmul.f32 %v78, %v78
  %v83 = vmul.f32 %v79, %v79
  %v84 = vmul.f32 %v80, %v80
  %v85 = vmul.f32 %v81, -0.00019515296
  %v86 = vmul.f32 %v82, -0.00019515296
  %v87 = vmul.f32 %v83, -0.00019515296
  %v88 = vmul.f32 %v84, -0.00019515296
  %v89 = vadd.f32 %v85, 0.008332161
  %v90 = vadd.f32 %v86, 0.008332161
  %v91 = vadd.f32 %v87, 0.008332161
  %v92 = vadd.f32 %v88, 0.008332161
  %v93 = vmul.f32 %v89, %v81
  %v94 = vmul.f32 %v90, %v82
  %v95 = vmul.f32 %v91, %v83
  %v96 = vmul.f32 %v92, %v84
  %v97 = vadd.f32 %v93, -0.16666655
  %v98 = vadd.f32 %v94, -0.16666655
  %v99 = vadd.f32 %v95, -0.16666655
  %v100 = vadd.f32 %v96, -0.16666655
  %v101 = vmul.f32 %v97, %v81
  %v102 = vmul.f32 %v98, %v82
  %v103 = vmul.f32 %v99, %v83
  %v104 = vmul.f32 %v100, %v84
  %v105 = vmul.f32 %v101, %v77
  %v106 = vmul.f32 %v102, %v78
  %v107 = vmul.f32 %v103, %v79
  %v108 = vmul.f32 %v104, %v80
  %v109 = vadd.f32 %v105, %v77
  %v110 = vadd.f32 %v106, %v78
  %v111 = vadd.f32 %v107, %v79
  %v112 = vadd.f32 %v108, %v80
  %v113 = vmul.f32 %v81, 2.4433157e-05
  %v114 = vmul.f32 %v82, 2.4433157e-05
  %v115 = vmul.f32 %v83, 2.4433157e-05
  %v116 = vmul.f32 %v84, 2.4433157e-05
  %v117 = vadd.f32 %v113, -0.0013887316
  %v118 = vadd.f32 %v114, -0.0013887316
  %v119 = vadd.f32 %v115, -0.0013887316
  %v120 = vadd.f32 %v116, -0.0013887316
  %v121 = vmul.f32 %v117, %v81
  %v122 = vmul.f32 %v118, %v82
  %v123 = vmul.f32 %v119, %v83
  %v124 = vmul.f32 %v120, %v84
  %v125 = vadd.f32 %v121, 0.041666646
  %v126 = vadd.f32 %v122, 0.041666646
  %v127 = vadd.f32 %v123, 0.041666646
  %v128 = vadd.f32 %v124, 0.041666646
  %v129 = vmul.f32 %v125, %v81
  %v130 = vmul.f32 %v126, %v82
  %v131 = vmul.f32 %v127, %v83
  %v132 = vmul.f32 %v128, %v84
  %v133 = vmul.f32 %v129, %v81
  %v134 = vmul.f32 %v130, %v82
  %v135 = vmul.f32 %v131, %v83
  %v136 = vmul.f32 %v132, %v84
  %v137 = vmul.f32 %v81, 0.5
  %v138 = vmul.f32 %v82, 0.5
  %v139 = vmul.f32 %v83, 0.5
  %v140 = vmul.f32 %v84, 0.5
  %v141 = vsub.f32 %v133, %v137
  %v142 = vsub.f32 %v134, %v138
  %v143 = vsub.f32 %v135, %v139
  %v144 = vsub.f32 %v136, %v140
  %v145 = vadd.f32 %v141, 1.0
  %v146 = vadd.f32 %v142, 1.0
  %v147 = vadd.f32 %v143, 1.0
  %v148 = vadd.f32 %v144, 1.0
  %v149 = vcvt.f32.s32.to.zero.pseudo %v53
  %v150 = vcvt.f32.s32.to.zero.pseudo %v54
  %v151 = vcvt.f32.s32.to.zero.pseudo %v55
  %v152 = vcvt.f32.s32.to.zero.pseudo %v56
  %v153 = vand.u32 %v149, 1
  %v154 = vand.u32 %v150, 1
  %v155 = vand.u32 %v151, 1
  %v156 = vand.u32 %v152, 1
  %vm157 = vcmp.ne.s32.totalorder %v153, 0
  %vm158 = vcmp.ne.s32.totalorder %v154, 0
  %vm159 = vcmp.ne.s32.totalorder %v155, 0
  %vm160 = vcmp.ne.s32.totalorder %v156, 0
  %v161 = vsel %vm157, %v145, %v109
  %v162 = vsel %vm158, %v146, %v110
  %v163 = vsel %vm159, %v147, %v111
  %v164 = vsel %vm160, %v148, %v112
  %v165 = vsel %vm157, %v109, %v145
  %v166 = vsel %vm158, %v110, %v146
  %v167 = vsel %vm159, %v111, %v147
  %v168 = vsel %vm160, %v112, %v148
  %v169 = vand.u32 %v149, 2
  %v170 = vand.u32 %v150, 2
  %v171 = vand.u32 %v151, 2
  %v172 = vand.u32 %v152, 2
  %vm173 = vcmp.ne.s32.totalorder %v169, 0
  %vm174 = vcmp.ne.s32.totalorder %v170, 0
  %vm175 = vcmp.ne.s32.totalorder %v171, 0
  %vm176 = vcmp.ne.s32.totalorder %v172, 0
  %v177 = vsub.f32 0.0, %v161
  %v178 = vsub.f32 0.0, %v162
  %v179 = vsub.f32 0.0, %v163
  %v180 = vsub.f32 0.0, %v164
  %v181 = vsel %vm173, %v177, %v161
  %v182 = vsel %vm174, %v178, %v162
  %v183 = vsel %vm175, %v179, %v163
  %v184 = vsel %vm176, %v180, %v164
  %v185 = vadd.s32 %v149, 1
  %v186 = vadd.s32 %v150, 1
  %v187 = vadd.s32 %v151, 1
  %v188 = vadd.s32 %v152, 1
  %v189 = vand.u32 %v185, 2
  %v190 = vand.u32 %v186, 2
  %v191 = vand.u32 %v187, 2
  %v192 = vand.u32 %v188, 2
  %vm193 = vcmp.ne.s32.totalorder %v189, 0
  %vm194 = vcmp.ne.s32.totalorder %v190, 0
  %vm195 = vcmp.ne.s32.totalorder %v191, 0
  %vm196 = vcmp.ne.s32.totalorder %v192, 0
  %v197 = vsub.f32 0.0, %v165
  %v198 = vsub.f32 0.0, %v166
  %v199 = vsub.f32 0.0, %v167
  %v200 = vsub.f32 0.0, %v168
  %v201 = vsel %vm193, %v197, %v165
  %v202 = vsel %vm194, %v198, %v166
  %v203 = vsel %vm195, %v199, %v167
  %v204 = vsel %vm196, %v200, %v168
  %205 = vxpose.xlu0.b32.start [1/16] %v181, 128
  %206 = vxpose.xlu0.b32.cont [2/16] %v182, 128
  %207 = vxpose.xlu0.b32.cont [3/16] %v183, 128
  %208 = vxpose.xlu0.b32.cont [4/16] %v184, 128
  %209 = vxpose.xlu0.b32.cont [5/16] %v201, 128
  %210 = vxpose.xlu0.b32.cont [6/16] %v202, 128
  %211 = vxpose.xlu0.b32.cont [7/16] %v203, 128
  %212 = vxpose.xlu0.b32.cont [8/16] %v204, 128
  %213 = vxpose.xlu0.b32.cont [9/16] 0.0, 128
  %214 = vxpose.xlu0.b32.cont [10/16] 0.0, 128
  %215 = vxpose.xlu0.b32.cont [11/16] 0.0, 128
  %216 = vxpose.xlu0.b32.cont [12/16] 0.0, 128
  %217 = vxpose.xlu0.b32.cont [13/16] 0.0, 128
  %218 = vxpose.xlu0.b32.cont [14/16] 0.0, 128
  %219 = vxpose.xlu0.b32.cont [15/16] 0.0, 128
  %220 = vxpose.xlu0.b32.end [16/16] 0.0, 128
  %v221 = vpop.trf.xlu0
  %v222 = vpop.trf.xlu0
  %v223 = vpop.trf.xlu0
  %v224 = vpop.trf.xlu0
  %v225 = vpop.trf.xlu0
  %v226 = vpop.trf.xlu0
  %v227 = vpop.trf.xlu0
  %v228 = vpop.trf.xlu0
  %v229 = vpop.trf.xlu0
  %v230 = vpop.trf.xlu0
  %v231 = vpop.trf.xlu0
  %v232 = vpop.trf.xlu0
  %v233 = vpop.trf.xlu0
  %v234 = vpop.trf.xlu0
  %v235 = vpop.trf.xlu0
  %v236 = vpop.trf.xlu0
  %vm237 = vcmask 523264
  %238 = vst.msk [vmem:[%s2] sm:$0xff] %vm237, %v221
  %239 = vst.msk [vmem:[%s2 + $0x8] sm:$0xff] %vm237, %v222
  %240 = vst.msk [vmem:[%s2 + $0x10] sm:$0xff] %vm237, %v223
  %241 = vst.msk [vmem:[%s2 + $0x18] sm:$0xff] %vm237, %v224
  %242 = vst.msk [vmem:[%s2 + $0x20] sm:$0xff] %vm237, %v225
  %243 = vst.msk [vmem:[%s2 + $0x28] sm:$0xff] %vm237, %v226
  %244 = vst.msk [vmem:[%s2 + $0x30] sm:$0xff] %vm237, %v227
  %245 = vst.msk [vmem:[%s2 + $0x38] sm:$0xff] %vm237, %v228
  %246 = vst.msk [vmem:[%s2 + $0x40] sm:$0xff] %vm237, %v229
  %247 = vst.msk [vmem:[%s2 + $0x48] sm:$0xff] %vm237, %v230
  %248 = vst.msk [vmem:[%s2 + $0x50] sm:$0xff] %vm237, %v231
  %249 = vst.msk [vmem:[%s2 + $0x58] sm:$0xff] %vm237, %v232
  %250 = vst.msk [vmem:[%s2 + $0x60] sm:$0xff] %vm237, %v233
  %251 = vst.msk [vmem:[%s2 + $0x68] sm:$0xff] %vm237, %v234
  %252 = vst.msk [vmem:[%s2 + $0x70] sm:$0xff] %vm237, %v235
  %253 = vst.msk [vmem:[%s2 + $0x78] sm:$0xff] %vm237, %v236
  %v254 = vld [vmem:[%s0 + $0x1] sm:$0x1]
  %v255 = vmul.f32 %v254, 6.2831855
  %v256 = vlaneseq
  %v257 = vshrl.u32 %v256, 7
  %v258 = vsub.s32 0, %v257
  %v259 = vrot.slane %v255, %v258
  %v260 = vmul.f32 %v20, %v259
  %v261 = vmul.f32 %v25, %v259
  %v262 = vmul.f32 %v30, %v259
  %v263 = vmul.f32 %v35, %v259
  %v264 = vmul.f32 %v260, 0.63661975
  %v265 = vmul.f32 %v261, 0.63661975
  %v266 = vmul.f32 %v262, 0.63661975
  %v267 = vmul.f32 %v263, 0.63661975
  %v268 = vadd.f32 %v264, 0.5
  %v269 = vadd.f32 %v265, 0.5
  %v270 = vadd.f32 %v266, 0.5
  %v271 = vadd.f32 %v267, 0.5
  %v272 = vfloor.f32 %v268
  %v273 = vfloor.f32 %v269
  %v274 = vfloor.f32 %v270
  %v275 = vfloor.f32 %v271
  %v276 = vmul.f32 %v272, 1.5703125
  %v277 = vmul.f32 %v273, 1.5703125
  %v278 = vmul.f32 %v274, 1.5703125
  %v279 = vmul.f32 %v275, 1.5703125
  %v280 = vsub.f32 %v260, %v276
  %v281 = vsub.f32 %v261, %v277
  %v282 = vsub.f32 %v262, %v278
  %v283 = vsub.f32 %v263, %v279
  %v284 = vmul.f32 %v272, 0.0004837513
  %v285 = vmul.f32 %v273, 0.0004837513
  %v286 = vmul.f32 %v274, 0.0004837513
  %v287 = vmul.f32 %v275, 0.0004837513
  %v288 = vsub.f32 %v280, %v284
  %v289 = vsub.f32 %v281, %v285
  %v290 = vsub.f32 %v282, %v286
  %v291 = vsub.f32 %v283, %v287
  %v292 = vmul.f32 %v272, 7.54979e-08
  %v293 = vmul.f32 %v273, 7.54979e-08
  %v294 = vmul.f32 %v274, 7.54979e-08
  %v295 = vmul.f32 %v275, 7.54979e-08
  %v296 = vsub.f32 %v288, %v292
  %v297 = vsub.f32 %v289, %v293
  %v298 = vsub.f32 %v290, %v294
  %v299 = vsub.f32 %v291, %v295
  %v300 = vmul.f32 %v296, %v296
  %v301 = vmul.f32 %v297, %v297
  %v302 = vmul.f32 %v298, %v298
  %v303 = vmul.f32 %v299, %v299
  %v304 = vmul.f32 %v300, -0.00019515296
  %v305 = vmul.f32 %v301, -0.00019515296
  %v306 = vmul.f32 %v302, -0.00019515296
  %v307 = vmul.f32 %v303, -0.00019515296
  %v308 = vadd.f32 %v304, 0.008332161
  %v309 = vadd.f32 %v305, 0.008332161
  %v310 = vadd.f32 %v306, 0.008332161
  %v311 = vadd.f32 %v307, 0.008332161
  %v312 = vmul.f32 %v308, %v300
  %v313 = vmul.f32 %v309, %v301
  %v314 = vmul.f32 %v310, %v302
  %v315 = vmul.f32 %v311, %v303
  %v316 = vadd.f32 %v312, -0.16666655
  %v317 = vadd.f32 %v313, -0.16666655
  %v318 = vadd.f32 %v314, -0.16666655
  %v319 = vadd.f32 %v315, -0.16666655
  %v320 = vmul.f32 %v316, %v300
  %v321 = vmul.f32 %v317, %v301
  %v322 = vmul.f32 %v318, %v302
  %v323 = vmul.f32 %v319, %v303
  %v324 = vmul.f32 %v320, %v296
  %v325 = vmul.f32 %v321, %v297
  %v326 = vmul.f32 %v322, %v298
  %v327 = vmul.f32 %v323, %v299
  %v328 = vadd.f32 %v324, %v296
  %v329 = vadd.f32 %v325, %v297
  %v330 = vadd.f32 %v326, %v298
  %v331 = vadd.f32 %v327, %v299
  %v332 = vmul.f32 %v300, 2.4433157e-05
  %v333 = vmul.f32 %v301, 2.4433157e-05
  %v334 = vmul.f32 %v302, 2.4433157e-05
  %v335 = vmul.f32 %v303, 2.4433157e-05
  %v336 = vadd.f32 %v332, -0.0013887316
  %v337 = vadd.f32 %v333, -0.0013887316
  %v338 = vadd.f32 %v334, -0.0013887316
  %v339 = vadd.f32 %v335, -0.0013887316
  %v340 = vmul.f32 %v336, %v300
  %v341 = vmul.f32 %v337, %v301
  %v342 = vmul.f32 %v338, %v302
  %v343 = vmul.f32 %v339, %v303
  %v344 = vadd.f32 %v340, 0.041666646
  %v345 = vadd.f32 %v341, 0.041666646
  %v346 = vadd.f32 %v342, 0.041666646
  %v347 = vadd.f32 %v343, 0.041666646
  %v348 = vmul.f32 %v344, %v300
  %v349 = vmul.f32 %v345, %v301
  %v350 = vmul.f32 %v346, %v302
  %v351 = vmul.f32 %v347, %v303
  %v352 = vmul.f32 %v348, %v300
  %v353 = vmul.f32 %v349, %v301
  %v354 = vmul.f32 %v350, %v302
  %v355 = vmul.f32 %v351, %v303
  %v356 = vmul.f32 %v300, 0.5
  %v357 = vmul.f32 %v301, 0.5
  %v358 = vmul.f32 %v302, 0.5
  %v359 = vmul.f32 %v303, 0.5
  %v360 = vsub.f32 %v352, %v356
  %v361 = vsub.f32 %v353, %v357
  %v362 = vsub.f32 %v354, %v358
  %v363 = vsub.f32 %v355, %v359
  %v364 = vadd.f32 %v360, 1.0
  %v365 = vadd.f32 %v361, 1.0
  %v366 = vadd.f32 %v362, 1.0
  %v367 = vadd.f32 %v363, 1.0
  %v368 = vcvt.f32.s32.to.zero.pseudo %v272
  %v369 = vcvt.f32.s32.to.zero.pseudo %v273
  %v370 = vcvt.f32.s32.to.zero.pseudo %v274
  %v371 = vcvt.f32.s32.to.zero.pseudo %v275
  %v372 = vand.u32 %v368, 1
  %v373 = vand.u32 %v369, 1
  %v374 = vand.u32 %v370, 1
  %v375 = vand.u32 %v371, 1
  %vm376 = vcmp.ne.s32.totalorder %v372, 0
  %vm377 = vcmp.ne.s32.totalorder %v373, 0
  %vm378 = vcmp.ne.s32.totalorder %v374, 0
  %vm379 = vcmp.ne.s32.totalorder %v375, 0
  %v380 = vsel %vm376, %v364, %v328
  %v381 = vsel %vm377, %v365, %v329
  %v382 = vsel %vm378, %v366, %v330
  %v383 = vsel %vm379, %v367, %v331
  %v384 = vsel %vm376, %v328, %v364
  %v385 = vsel %vm377, %v329, %v365
  %v386 = vsel %vm378, %v330, %v366
  %v387 = vsel %vm379, %v331, %v367
  %v388 = vand.u32 %v368, 2
  %v389 = vand.u32 %v369, 2
  %v390 = vand.u32 %v370, 2
  %v391 = vand.u32 %v371, 2
  %vm392 = vcmp.ne.s32.totalorder %v388, 0
  %vm393 = vcmp.ne.s32.totalorder %v389, 0
  %vm394 = vcmp.ne.s32.totalorder %v390, 0
  %vm395 = vcmp.ne.s32.totalorder %v391, 0
  %v396 = vsub.f32 0.0, %v380
  %v397 = vsub.f32 0.0, %v381
  %v398 = vsub.f32 0.0, %v382
  %v399 = vsub.f32 0.0, %v383
  %v400 = vsel %vm392, %v396, %v380
  %v401 = vsel %vm393, %v397, %v381
  %v402 = vsel %vm394, %v398, %v382
  %v403 = vsel %vm395, %v399, %v383
  %v404 = vadd.s32 %v368, 1
  %v405 = vadd.s32 %v369, 1
  %v406 = vadd.s32 %v370, 1
  %v407 = vadd.s32 %v371, 1
  %v408 = vand.u32 %v404, 2
  %v409 = vand.u32 %v405, 2
  %v410 = vand.u32 %v406, 2
  %v411 = vand.u32 %v407, 2
  %vm412 = vcmp.ne.s32.totalorder %v408, 0
  %vm413 = vcmp.ne.s32.totalorder %v409, 0
  %vm414 = vcmp.ne.s32.totalorder %v410, 0
  %vm415 = vcmp.ne.s32.totalorder %v411, 0
  %v416 = vsub.f32 0.0, %v384
  %v417 = vsub.f32 0.0, %v385
  %v418 = vsub.f32 0.0, %v386
  %v419 = vsub.f32 0.0, %v387
  %v420 = vsel %vm412, %v416, %v384
  %v421 = vsel %vm413, %v417, %v385
  %v422 = vsel %vm414, %v418, %v386
  %v423 = vsel %vm415, %v419, %v387
  %424 = vxpose.xlu0.b32.start [1/16] %v400, 128
  %425 = vxpose.xlu0.b32.cont [2/16] %v401, 128
  %426 = vxpose.xlu0.b32.cont [3/16] %v402, 128
  %427 = vxpose.xlu0.b32.cont [4/16] %v403, 128
  %428 = vxpose.xlu0.b32.cont [5/16] %v420, 128
  %429 = vxpose.xlu0.b32.cont [6/16] %v421, 128
  %430 = vxpose.xlu0.b32.cont [7/16] %v422, 128
  %431 = vxpose.xlu0.b32.cont [8/16] %v423, 128
  %432 = vxpose.xlu0.b32.cont [9/16] 0.0, 128
  %433 = vxpose.xlu0.b32.cont [10/16] 0.0, 128
  %434 = vxpose.xlu0.b32.cont [11/16] 0.0, 128
  %435 = vxpose.xlu0.b32.cont [12/16] 0.0, 128
  %436 = vxpose.xlu0.b32.cont [13/16] 0.0, 128
  %437 = vxpose.xlu0.b32.cont [14/16] 0.0, 128
  %438 = vxpose.xlu0.b32.cont [15/16] 0.0, 128
  %439 = vxpose.xlu0.b32.end [16/16] 0.0, 128
  %v440 = vpop.trf.xlu0
  %v441 = vpop.trf.xlu0
  %v442 = vpop.trf.xlu0
  %v443 = vpop.trf.xlu0
  %v444 = vpop.trf.xlu0
  %v445 = vpop.trf.xlu0
  %v446 = vpop.trf.xlu0
  %v447 = vpop.trf.xlu0
  %v448 = vpop.trf.xlu0
  %v449 = vpop.trf.xlu0
  %v450 = vpop.trf.xlu0
  %v451 = vpop.trf.xlu0
  %v452 = vpop.trf.xlu0
  %v453 = vpop.trf.xlu0
  %v454 = vpop.trf.xlu0
  %v455 = vpop.trf.xlu0
  %s456 = scalar_lea.vmem %s2, 128
  %457 = vst.msk [vmem:[%s456] sm:$0xff] %vm237, %v440
  %458 = vst.msk [vmem:[%s456 + $0x8] sm:$0xff] %vm237, %v441
  %459 = vst.msk [vmem:[%s456 + $0x10] sm:$0xff] %vm237, %v442
  %460 = vst.msk [vmem:[%s456 + $0x18] sm:$0xff] %vm237, %v443
  %461 = vst.msk [vmem:[%s456 + $0x20] sm:$0xff] %vm237, %v444
  %462 = vst.msk [vmem:[%s456 + $0x28] sm:$0xff] %vm237, %v445
  %463 = vst.msk [vmem:[%s456 + $0x30] sm:$0xff] %vm237, %v446
  %464 = vst.msk [vmem:[%s456 + $0x38] sm:$0xff] %vm237, %v447
  %465 = vst.msk [vmem:[%s456 + $0x40] sm:$0xff] %vm237, %v448
  %466 = vst.msk [vmem:[%s456 + $0x48] sm:$0xff] %vm237, %v449
  %467 = vst.msk [vmem:[%s456 + $0x50] sm:$0xff] %vm237, %v450
  %468 = vst.msk [vmem:[%s456 + $0x58] sm:$0xff] %vm237, %v451
  %469 = vst.msk [vmem:[%s456 + $0x60] sm:$0xff] %vm237, %v452
  %470 = vst.msk [vmem:[%s456 + $0x68] sm:$0xff] %vm237, %v453
  %471 = vst.msk [vmem:[%s456 + $0x70] sm:$0xff] %vm237, %v454
  %472 = vst.msk [vmem:[%s456 + $0x78] sm:$0xff] %vm237, %v455
  // Predicated region
  $region10: #{tpu_custom_call.1} parent=0 // pred_check
    _
  $region11: #{tpu_custom_call.1} parent=0 // pred_check_branch
    %474 = sbr.rel (0) target = $region13
  $region12: #{tpu_custom_call.1} parent=0 // pred_region
    _
  $region13: #{tpu_custom_call.1} parent=0 // pred_fallthru
    _
  // Predicated region
  $region14: #{tpu_custom_call.1} parent=0 // pred_check
    _
  $region15: #{tpu_custom_call.1} parent=0 // pred_check_branch
    %476 = sbr.rel (0) target = $region17
  $region16: #{tpu_custom_call.1} parent=0 // pred_region
    _
  $region17: #{tpu_custom_call.1} parent=0 // pred_fallthru
    _

</llo_original>
